<compile_context>
chip_gen: v7x
topology: tpu7x:2x2x1
jax: 0.10.0
libtpu: 0.0.40
codegen_flags: <defaults>
</compile_context>

<pallas_src>
import functools

import jax
import jax.numpy as jnp
from jax.experimental import pallas as pl
from jax.experimental.pallas import tpu as pltpu


# ---------------------------------------------------------------------------
# Path 1 (general): token table stays in HBM; rows are gathered with manual
# DMAs, double-buffered across the inner (batch) grid axis.
# ---------------------------------------------------------------------------
def _embeddings_gather_kernel(ids_ref,      # scalar prefetch: (B*S,) int32 in SMEM
                              tok_hbm,      # (V, H) token table, left in HBM
                              pos_ref,      # (T, H) positional rows of tile t
                              gamma_ref,    # (1, H) LayerNorm weight
                              beta_ref,     # (1, H) LayerNorm bias
                              out_ref,      # (1, T, H) output block
                              tok_buf,      # VMEM (2, T, H): double-buffered gather
                              sems,         # DMA semaphores (2,): one aggregate sem/slot
                              *, tile, seq_len, batch):
    t = pl.program_id(0)        # sequence-tile index (outer, "parallel")
    b = pl.program_id(1)        # batch index (inner, "arbitrary": carries the buffer)

    cur = b % 2                 # slot holding batch element b's rows
    nxt = 1 - cur

    def issue_gather(batch_idx, slot):
        # T row-gather DMAs, all signalling the same per-slot semaphore so one
        # aggregate wait (sized tile*H) retires them together.
        base = batch_idx * seq_len + t * tile

        def issue_row(r):
            tok_id = ids_ref[base + r]
            pltpu.make_async_copy(
                tok_hbm.at[pl.ds(tok_id, 1), :],
                tok_buf.at[slot, pl.ds(r, 1), :],
                sems.at[slot],
            ).start()

        if tile <= 32:
            for r in range(tile):          # fully unrolled: all gathers in flight
                issue_row(r)
        else:
            def body(r, carry):
                issue_row(r)
                return carry
            jax.lax.fori_loop(0, tile, body, None, unroll=8)

    # Prime the pipeline at the start of every inner (batch) sweep.
    @pl.when(b == 0)
    def _():
        issue_gather(0, 0)

    # Prefetch the next batch element's rows; they complete while this step's
    # LayerNorm and output writeback run.
    @pl.when(b + 1 < batch)
    def _():
        issue_gather(b + 1, nxt)

    # One aggregate wait for the current slot: .wait() only uses the semaphore
    # and the destination byte count (tile * H * itemsize), which equals the
    # sum of the T row copies started on sems[cur].  The src ref is only there
    # to build a shape-consistent descriptor; no copy is started here.
    pltpu.make_async_copy(tok_buf.at[nxt], tok_buf.at[cur], sems.at[cur]).wait()

    # add + LayerNorm(eps=1e-12); math in f32 regardless of table dtype.
    x = tok_buf[cur].astype(jnp.float32) + pos_ref[...].astype(jnp.float32)
    mu = jnp.mean(x, axis=-1, keepdims=True)
    xc = x - mu
    var = jnp.mean(xc * xc, axis=-1, keepdims=True)
    scale = gamma_ref[...].astype(jnp.float32) * jax.lax.rsqrt(var + 1e-12)
    y = xc * scale + beta_ref[...].astype(jnp.float32)
    out_ref[0] = y.astype(out_ref.dtype)


# ---------------------------------------------------------------------------
# Path 2 (small tables): the whole token table is resident in VMEM and rows
# are gathered with in-VMEM dynamic slices — no per-row HBM DMAs at all.
# ---------------------------------------------------------------------------
def _embeddings_resident_kernel(ids_ref,     # (B*S,) int32 in SMEM
                                tok_ref,     # (V, H) token table, resident in VMEM
                                pos_ref,     # (T, H)
                                gamma_ref,   # (1, H)
                                beta_ref,    # (1, H)
                                out_ref,     # (1, T, H)
                                rows_buf,    # VMEM (T, H) gathered rows
                                *, tile, seq_len):
    t = pl.program_id(0)
    b = pl.program_id(1)
    base = b * seq_len + t * tile
    for r in range(tile):
        rows_buf[pl.ds(r, 1), :] = tok_ref[pl.ds(ids_ref[base + r], 1), :]

    x = rows_buf[...].astype(jnp.float32) + pos_ref[...].astype(jnp.float32)
    mu = jnp.mean(x, axis=-1, keepdims=True)
    xc = x - mu
    var = jnp.mean(xc * xc, axis=-1, keepdims=True)
    scale = gamma_ref[...].astype(jnp.float32) * jax.lax.rsqrt(var + 1e-12)
    y = xc * scale + beta_ref[...].astype(jnp.float32)
    out_ref[0] = y.astype(out_ref.dtype)


def _pick_tile(seq_len, max_tile=256):
    """Largest divisor of seq_len that is a multiple of 8 and <= max_tile.

    Falls back to the full sequence length when no such divisor exists; a
    full-extent block dim is exempt from the (8, 128) sublane constraint."""
    best = None
    for cand in range(8, min(seq_len, max_tile) + 1, 8):
        if seq_len % cand == 0:
            best = cand
    return best if best is not None else seq_len


def _embeddings_gather_call(ids_flat, tok_table, pos_slice, gamma2, beta2,
                            *, batch, seq_len, tile, out_dtype):
    num_tiles = seq_len // tile
    V, H = tok_table.shape
    kernel = functools.partial(_embeddings_gather_kernel,
                               tile=tile, seq_len=seq_len, batch=batch)
    grid_spec = pltpu.PrefetchScalarGridSpec(
        num_scalar_prefetch=1,
        # Outer axis = sequence tiles ("parallel", megacore-shardable on v7x);
        # inner axis = batch ("arbitrary": the gather double-buffer carries
        # state along it).  Batch-innermost keeps the pos-block index (t, 0)
        # constant along the inner axis so it is fetched once per tile.
        # TODO(synk): when num_tiles == 1 and B is large, flipping the grid
        #             order (or splitting tiles in two) would keep both v7x
        #             TensorCores busy.
        grid=(num_tiles, batch),
        in_specs=[
            pl.BlockSpec(memory_space=pl.ANY),                    # token table in HBM
            pl.BlockSpec((tile, H), lambda t, b, ids: (t, 0)),    # pos rows
            pl.BlockSpec((1, H), lambda t, b, ids: (0, 0)),       # gamma
            pl.BlockSpec((1, H), lambda t, b, ids: (0, 0)),       # beta
        ],
        out_specs=pl.BlockSpec((1, tile, H), lambda t, b, ids: (b, t, 0)),
        scratch_shapes=[
            pltpu.VMEM((2, tile, H), tok_table.dtype),            # double-buffered gather
            pltpu.SemaphoreType.DMA((2,)),                        # one aggregate sem per slot
        ],
    )
    return pl.pallas_call(
        kernel,
        out_shape=jax.ShapeDtypeStruct((batch, seq_len, H), out_dtype),
        grid_spec=grid_spec,
        compiler_params=pltpu.CompilerParams(
            dimension_semantics=("parallel", "arbitrary")),
    )(ids_flat, tok_table, pos_slice, gamma2, beta2)


def _embeddings_resident_call(ids_flat, tok_table, pos_slice, gamma2, beta2,
                              *, batch, seq_len, tile, out_dtype):
    num_tiles = seq_len // tile
    V, H = tok_table.shape
    kernel = functools.partial(_embeddings_resident_kernel,
                               tile=tile, seq_len=seq_len)
    table_bytes = int(tok_table.size) * tok_table.dtype.itemsize
    # Account for Pallas double-buffering of the (constant-index) table block,
    # plus working blocks; cap below physical VMEM.
    vmem_limit = int(min(112 * 1024 * 1024, 2 * table_bytes + 16 * 1024 * 1024))
    grid_spec = pltpu.PrefetchScalarGridSpec(
        num_scalar_prefetch=1,
        grid=(num_tiles, batch),
        in_specs=[
            pl.BlockSpec((V, H), lambda t, b, ids: (0, 0)),       # whole table resident
            pl.BlockSpec((tile, H), lambda t, b, ids: (t, 0)),
            pl.BlockSpec((1, H), lambda t, b, ids: (0, 0)),
            pl.BlockSpec((1, H), lambda t, b, ids: (0, 0)),
        ],
        out_specs=pl.BlockSpec((1, tile, H), lambda t, b, ids: (b, t, 0)),
        scratch_shapes=[pltpu.VMEM((tile, H), tok_table.dtype)],
    )
    return pl.pallas_call(
        kernel,
        out_shape=jax.ShapeDtypeStruct((batch, seq_len, H), out_dtype),
        grid_spec=grid_spec,
        compiler_params=pltpu.CompilerParams(
            dimension_semantics=("parallel", "parallel"),
            vmem_limit_bytes=vmem_limit),
    )(ids_flat, tok_table, pos_slice, gamma2, beta2)


def embeddings_forward(input_ids, tok_table, pos_table, gamma, beta, *,
                       max_tile=256, out_dtype=jnp.float32,
                       table_in_vmem=None,
                       vmem_table_budget_bytes=32 * 1024 * 1024):
    """input_ids: (B, S) integer ids -> (B, S, H) embeddings (LayerNorm'ed).

    out_dtype=jnp.bfloat16 halves the output writeback traffic (LayerNorm math
    stays in f32).  table_in_vmem: True / False / None(auto by budget); the
    default 32 MiB budget is safe on every generation (v7x has 64 MiB VMEM per
    TensorCore) — raise it on v5e/v6e (128 MiB) for e.g. a bf16 BERT table.
    Note: token ids must lie in [0, vocab_size); out-of-range ids (e.g. -1
    padding) would trip the DMA bounds check on the gather path."""
    B, S = input_ids.shape
    V, H = tok_table.shape
    P, _ = pos_table.shape
    assert S <= P, "sequence length exceeds max_position_embeddings"

    tile = _pick_tile(S, max_tile)
    ids_flat = input_ids.reshape(-1).astype(jnp.int32)   # 1-D: no 2-D SMEM padding
    pos_slice = pos_table[:S]                             # exactly the rows used
    gamma2 = gamma.reshape(1, H)
    beta2 = beta.reshape(1, H)

    if table_in_vmem is None:
        table_in_vmem = (2 * V * H * tok_table.dtype.itemsize
                         <= vmem_table_budget_bytes)

    common = dict(batch=B, seq_len=S, tile=tile, out_dtype=out_dtype)
    if table_in_vmem:
        return _embeddings_resident_call(ids_flat, tok_table, pos_slice,
                                         gamma2, beta2, **common)
    return _embeddings_gather_call(ids_flat, tok_table, pos_slice,
                                   gamma2, beta2, **common)


def embeddings_reference(input_ids, tok_table, pos_table, gamma, beta):
    S = input_ids.shape[1]
    tok = jnp.take(tok_table, input_ids, axis=0).astype(jnp.float32)
    pos = jnp.take(pos_table, jnp.arange(S), axis=0)[None].astype(jnp.float32)
    x = tok + pos
    mu = jnp.mean(x, axis=-1, keepdims=True)
    var = jnp.mean((x - mu) ** 2, axis=-1, keepdims=True)
    y = (x - mu) * jax.lax.rsqrt(var + 1e-12)
    return y * gamma + beta


if __name__ == "__main__":
    # Small synthetic config
    vocab_size = 64
    max_position_embeddings = 16
    hidden_size = 128
    batch = 2
    seq = 8

    key = jax.random.PRNGKey(0)
    k_ids, k_tok, k_pos, k_g, k_b = jax.random.split(key, 5)

    input_ids = jax.random.randint(k_ids, (batch, seq), 0, vocab_size, dtype=jnp.int32)
    tok_table = jax.random.normal(k_tok, (vocab_size, hidden_size), jnp.float32) * 0.02
    pos_table = jax.random.normal(k_pos, (max_position_embeddings, hidden_size), jnp.float32) * 0.02
    # PyTorch LayerNorm init: weight=1, bias=0; perturb slightly for a non-trivial check.
    gamma = jnp.ones((hidden_size,), jnp.float32) + 0.01 * jax.random.normal(k_g, (hidden_size,))
    beta = 0.01 * jax.random.normal(k_b, (hidden_size,), jnp.float32)

    # Exercise the general pipelined HBM-gather path (the one a realistic,
    # large-vocab table takes); tiny tables like this one would otherwise
    # auto-select the VMEM-resident fast path.
    out = embeddings_forward(input_ids, tok_table, pos_table, gamma, beta,
                             table_in_vmem=False)
    out = jax.block_until_ready(out)

    ref = embeddings_reference(input_ids, tok_table, pos_table, gamma, beta)
    assert out.shape == (batch, seq, hidden_size)
    assert jnp.allclose(out, ref, atol=1e-5, rtol=1e-5), "mismatch vs reference"

    print("KERNEL_OK")
</pallas_src>

<mosaic_0001>
module attributes {stable_mosaic.version = 11 : i64} {
  func.func @_embeddings_gather_kernel(%arg0: i32, %arg1: i32, %arg2: memref<16xi32, #tpu.memory_space<smem>>, %arg3: memref<64x128xf32, #tpu.memory_space<any>>, %arg4: memref<8x128xf32, #tpu.memory_space<vmem>>, %arg5: memref<1x128xf32, #tpu.memory_space<vmem>>, %arg6: memref<1x128xf32, #tpu.memory_space<vmem>>, %arg7: memref<1x8x128xf32, #tpu.memory_space<vmem>>, %arg8: memref<2x8x128xf32, #tpu.memory_space<vmem>>, %arg9: memref<2x!tpu.dma_semaphore, #tpu.memory_space<semaphore_mem>>) attributes {dimension_semantics = [#tpu.dimension_semantics<parallel>, #tpu.dimension_semantics<arbitrary>], iteration_bounds = array<i64: 1, 2>, scalar_prefetch = 1 : i64, scratch_operands = 2 : i64, tpu.core_type = #tpu.core_type<tc>, window_params = [{}, {transform_indices = @transform_1, window_bounds = array<i64: 8, 128>}, {pipeline_mode = #tpu.pipeline_mode<synchronous>, transform_indices = @transform_2, window_bounds = array<i64: 1, 128>}, {pipeline_mode = #tpu.pipeline_mode<synchronous>, transform_indices = @transform_3, window_bounds = array<i64: 1, 128>}, {transform_indices = @transform_4, window_bounds = array<i64: 1, 8, 128>}]} {
    %c2_i32 = arith.constant 2 : i32
    %c0_i32 = arith.constant 0 : i32
    %0 = arith.cmpi eq, %c2_i32, %c0_i32 : i32
    %c1_i32 = arith.constant 1 : i32
    %1 = arith.select %0, %c1_i32, %c2_i32 : i32
    %2 = arith.remsi %arg1, %1 : i32
    %c0_i32_0 = arith.constant 0 : i32
    %3 = arith.cmpi ne, %2, %c0_i32_0 : i32
    %c0_i32_1 = arith.constant 0 : i32
    %4 = arith.cmpi slt, %2, %c0_i32_1 : i32
    %c0_i32_2 = arith.constant 0 : i32
    %5 = arith.cmpi slt, %1, %c0_i32_2 : i32
    %6 = arith.xori %4, %5 : i1
    %7 = arith.andi %6, %3 : i1
    %8 = arith.addi %2, %1 : i32
    %9 = arith.select %7, %8, %2 : i32
    %c1_i32_3 = arith.constant 1 : i32
    %10 = arith.subi %c1_i32_3, %9 : i32
    %c0_i32_4 = arith.constant 0 : i32
    %11 = arith.cmpi eq, %arg1, %c0_i32_4 : i32
    %12 = arith.extui %11 : i1 to i32
    %c0_i32_5 = arith.constant 0 : i32
    %13 = arith.cmpi ne, %12, %c0_i32_5 : i32
    scf.if %13 {
      %c8_i32 = arith.constant 8 : i32
      %54 = arith.muli %arg0, %c8_i32 : i32
      %c0_i32_27 = arith.constant 0 : i32
      %55 = arith.addi %c0_i32_27, %54 : i32
      %c0_i32_28 = arith.constant 0 : i32
      %56 = arith.addi %55, %c0_i32_28 : i32
      %57 = arith.index_cast %56 : i32 to index
      %58 = memref.load %arg2[%57] : memref<16xi32, #tpu.memory_space<smem>>
      %c0_i32_29 = arith.constant 0 : i32
      %c0_i32_30 = arith.constant 0 : i32
      %c0_i32_31 = arith.constant 0 : i32
      %59 = tpu.memref_slice %arg3[%58, %c0_i32_31] : memref<64x128xf32, #tpu.memory_space<any>> -> memref<1x128xf32, #tpu.memory_space<any>>
      %c0_i32_32 = arith.constant 0 : i32
      %c0_i32_33 = arith.constant 0 : i32
      %60 = tpu.memref_slice %arg8[%c0_i32_29, %c0_i32_32, %c0_i32_33] : memref<2x8x128xf32, #tpu.memory_space<vmem>> -> memref<1x1x128xf32, #tpu.memory_space<vmem>>
      %61 = tpu.memref_squeeze %60 : memref<1x1x128xf32, #tpu.memory_space<vmem>> -> memref<1x128xf32, #tpu.memory_space<vmem>>
      %62 = tpu.memref_slice %arg9[%c0_i32_30] : memref<2x!tpu.dma_semaphore, #tpu.memory_space<semaphore_mem>> -> memref<1x!tpu.dma_semaphore, #tpu.memory_space<semaphore_mem>>
      %63 = tpu.memref_squeeze %62 : memref<1x!tpu.dma_semaphore, #tpu.memory_space<semaphore_mem>> -> memref<!tpu.dma_semaphore, #tpu.memory_space<semaphore_mem>>
      tpu.enqueue_dma source(%59 : memref<1x128xf32, #tpu.memory_space<any>>) target(%61 : memref<1x128xf32, #tpu.memory_space<vmem>>) target_semaphore(%63 : memref<!tpu.dma_semaphore, #tpu.memory_space<semaphore_mem>>)
      %c1_i32_34 = arith.constant 1 : i32
      %64 = arith.addi %55, %c1_i32_34 : i32
      %65 = arith.index_cast %64 : i32 to index
      %66 = memref.load %arg2[%65] : memref<16xi32, #tpu.memory_space<smem>>
      %c0_i32_35 = arith.constant 0 : i32
      %c0_i32_36 = arith.constant 0 : i32
      %c0_i32_37 = arith.constant 0 : i32
      %67 = tpu.memref_slice %arg3[%66, %c0_i32_37] : memref<64x128xf32, #tpu.memory_space<any>> -> memref<1x128xf32, #tpu.memory_space<any>>
      %c1_i32_38 = arith.constant 1 : i32
      %c0_i32_39 = arith.constant 0 : i32
      %68 = tpu.memref_slice %arg8[%c0_i32_35, %c1_i32_38, %c0_i32_39] : memref<2x8x128xf32, #tpu.memory_space<vmem>> -> memref<1x1x128xf32, #tpu.memory_space<vmem>>
      %69 = tpu.memref_squeeze %68 : memref<1x1x128xf32, #tpu.memory_space<vmem>> -> memref<1x128xf32, #tpu.memory_space<vmem>>
      %70 = tpu.memref_slice %arg9[%c0_i32_36] : memref<2x!tpu.dma_semaphore, #tpu.memory_space<semaphore_mem>> -> memref<1x!tpu.dma_semaphore, #tpu.memory_space<semaphore_mem>>
      %71 = tpu.memref_squeeze %70 : memref<1x!tpu.dma_semaphore, #tpu.memory_space<semaphore_mem>> -> memref<!tpu.dma_semaphore, #tpu.memory_space<semaphore_mem>>
      tpu.enqueue_dma source(%67 : memref<1x128xf32, #tpu.memory_space<any>>) target(%69 : memref<1x128xf32, #tpu.memory_space<vmem>>) target_semaphore(%71 : memref<!tpu.dma_semaphore, #tpu.memory_space<semaphore_mem>>)
      %c2_i32_40 = arith.constant 2 : i32
      %72 = arith.addi %55, %c2_i32_40 : i32
      %73 = arith.index_cast %72 : i32 to index
      %74 = memref.load %arg2[%73] : memref<16xi32, #tpu.memory_space<smem>>
      %c0_i32_41 = arith.constant 0 : i32
      %c0_i32_42 = arith.constant 0 : i32
      %c0_i32_43 = arith.constant 0 : i32
      %75 = tpu.memref_slice %arg3[%74, %c0_i32_43] : memref<64x128xf32, #tpu.memory_space<any>> -> memref<1x128xf32, #tpu.memory_space<any>>
      %c2_i32_44 = arith.constant 2 : i32
      %c0_i32_45 = arith.constant 0 : i32
      %76 = tpu.memref_slice %arg8[%c0_i32_41, %c2_i32_44, %c0_i32_45] : memref<2x8x128xf32, #tpu.memory_space<vmem>> -> memref<1x1x128xf32, #tpu.memory_space<vmem>>
      %77 = tpu.memref_squeeze %76 : memref<1x1x128xf32, #tpu.memory_space<vmem>> -> memref<1x128xf32, #tpu.memory_space<vmem>>
      %78 = tpu.memref_slice %arg9[%c0_i32_42] : memref<2x!tpu.dma_semaphore, #tpu.memory_space<semaphore_mem>> -> memref<1x!tpu.dma_semaphore, #tpu.memory_space<semaphore_mem>>
      %79 = tpu.memref_squeeze %78 : memref<1x!tpu.dma_semaphore, #tpu.memory_space<semaphore_mem>> -> memref<!tpu.dma_semaphore, #tpu.memory_space<semaphore_mem>>
      tpu.enqueue_dma source(%75 : memref<1x128xf32, #tpu.memory_space<any>>) target(%77 : memref<1x128xf32, #tpu.memory_space<vmem>>) target_semaphore(%79 : memref<!tpu.dma_semaphore, #tpu.memory_space<semaphore_mem>>)
      %c3_i32 = arith.constant 3 : i32
      %80 = arith.addi %55, %c3_i32 : i32
      %81 = arith.index_cast %80 : i32 to index
      %82 = memref.load %arg2[%81] : memref<16xi32, #tpu.memory_space<smem>>
      %c0_i32_46 = arith.constant 0 : i32
      %c0_i32_47 = arith.constant 0 : i32
      %c0_i32_48 = arith.constant 0 : i32
      %83 = tpu.memref_slice %arg3[%82, %c0_i32_48] : memref<64x128xf32, #tpu.memory_space<any>> -> memref<1x128xf32, #tpu.memory_space<any>>
      %c3_i32_49 = arith.constant 3 : i32
      %c0_i32_50 = arith.constant 0 : i32
      %84 = tpu.memref_slice %arg8[%c0_i32_46, %c3_i32_49, %c0_i32_50] : memref<2x8x128xf32, #tpu.memory_space<vmem>> -> memref<1x1x128xf32, #tpu.memory_space<vmem>>
      %85 = tpu.memref_squeeze %84 : memref<1x1x128xf32, #tpu.memory_space<vmem>> -> memref<1x128xf32, #tpu.memory_space<vmem>>
      %86 = tpu.memref_slice %arg9[%c0_i32_47] : memref<2x!tpu.dma_semaphore, #tpu.memory_space<semaphore_mem>> -> memref<1x!tpu.dma_semaphore, #tpu.memory_space<semaphore_mem>>
      %87 = tpu.memref_squeeze %86 : memref<1x!tpu.dma_semaphore, #tpu.memory_space<semaphore_mem>> -> memref<!tpu.dma_semaphore, #tpu.memory_space<semaphore_mem>>
      tpu.enqueue_dma source(%83 : memref<1x128xf32, #tpu.memory_space<any>>) target(%85 : memref<1x128xf32, #tpu.memory_space<vmem>>) target_semaphore(%87 : memref<!tpu.dma_semaphore, #tpu.memory_space<semaphore_mem>>)
      %c4_i32 = arith.constant 4 : i32
      %88 = arith.addi %55, %c4_i32 : i32
      %89 = arith.index_cast %88 : i32 to index
      %90 = memref.load %arg2[%89] : memref<16xi32, #tpu.memory_space<smem>>
      %c0_i32_51 = arith.constant 0 : i32
      %c0_i32_52 = arith.constant 0 : i32
      %c0_i32_53 = arith.constant 0 : i32
      %91 = tpu.memref_slice %arg3[%90, %c0_i32_53] : memref<64x128xf32, #tpu.memory_space<any>> -> memref<1x128xf32, #tpu.memory_space<any>>
      %c4_i32_54 = arith.constant 4 : i32
      %c0_i32_55 = arith.constant 0 : i32
      %92 = tpu.memref_slice %arg8[%c0_i32_51, %c4_i32_54, %c0_i32_55] : memref<2x8x128xf32, #tpu.memory_space<vmem>> -> memref<1x1x128xf32, #tpu.memory_space<vmem>>
      %93 = tpu.memref_squeeze %92 : memref<1x1x128xf32, #tpu.memory_space<vmem>> -> memref<1x128xf32, #tpu.memory_space<vmem>>
      %94 = tpu.memref_slice %arg9[%c0_i32_52] : memref<2x!tpu.dma_semaphore, #tpu.memory_space<semaphore_mem>> -> memref<1x!tpu.dma_semaphore, #tpu.memory_space<semaphore_mem>>
      %95 = tpu.memref_squeeze %94 : memref<1x!tpu.dma_semaphore, #tpu.memory_space<semaphore_mem>> -> memref<!tpu.dma_semaphore, #tpu.memory_space<semaphore_mem>>
      tpu.enqueue_dma source(%91 : memref<1x128xf32, #tpu.memory_space<any>>) target(%93 : memref<1x128xf32, #tpu.memory_space<vmem>>) target_semaphore(%95 : memref<!tpu.dma_semaphore, #tpu.memory_space<semaphore_mem>>)
      %c5_i32 = arith.constant 5 : i32
      %96 = arith.addi %55, %c5_i32 : i32
      %97 = arith.index_cast %96 : i32 to index
      %98 = memref.load %arg2[%97] : memref<16xi32, #tpu.memory_space<smem>>
      %c0_i32_56 = arith.constant 0 : i32
      %c0_i32_57 = arith.constant 0 : i32
      %c0_i32_58 = arith.constant 0 : i32
      %99 = tpu.memref_slice %arg3[%98, %c0_i32_58] : memref<64x128xf32, #tpu.memory_space<any>> -> memref<1x128xf32, #tpu.memory_space<any>>
      %c5_i32_59 = arith.constant 5 : i32
      %c0_i32_60 = arith.constant 0 : i32
      %100 = tpu.memref_slice %arg8[%c0_i32_56, %c5_i32_59, %c0_i32_60] : memref<2x8x128xf32, #tpu.memory_space<vmem>> -> memref<1x1x128xf32, #tpu.memory_space<vmem>>
      %101 = tpu.memref_squeeze %100 : memref<1x1x128xf32, #tpu.memory_space<vmem>> -> memref<1x128xf32, #tpu.memory_space<vmem>>
      %102 = tpu.memref_slice %arg9[%c0_i32_57] : memref<2x!tpu.dma_semaphore, #tpu.memory_space<semaphore_mem>> -> memref<1x!tpu.dma_semaphore, #tpu.memory_space<semaphore_mem>>
      %103 = tpu.memref_squeeze %102 : memref<1x!tpu.dma_semaphore, #tpu.memory_space<semaphore_mem>> -> memref<!tpu.dma_semaphore, #tpu.memory_space<semaphore_mem>>
      tpu.enqueue_dma source(%99 : memref<1x128xf32, #tpu.memory_space<any>>) target(%101 : memref<1x128xf32, #tpu.memory_space<vmem>>) target_semaphore(%103 : memref<!tpu.dma_semaphore, #tpu.memory_space<semaphore_mem>>)
      %c6_i32 = arith.constant 6 : i32
      %104 = arith.addi %55, %c6_i32 : i32
      %105 = arith.index_cast %104 : i32 to index
      %106 = memref.load %arg2[%105] : memref<16xi32, #tpu.memory_space<smem>>
      %c0_i32_61 = arith.constant 0 : i32
      %c0_i32_62 = arith.constant 0 : i32
      %c0_i32_63 = arith.constant 0 : i32
      %107 = tpu.memref_slice %arg3[%106, %c0_i32_63] : memref<64x128xf32, #tpu.memory_space<any>> -> memref<1x128xf32, #tpu.memory_space<any>>
      %c6_i32_64 = arith.constant 6 : i32
      %c0_i32_65 = arith.constant 0 : i32
      %108 = tpu.memref_slice %arg8[%c0_i32_61, %c6_i32_64, %c0_i32_65] : memref<2x8x128xf32, #tpu.memory_space<vmem>> -> memref<1x1x128xf32, #tpu.memory_space<vmem>>
      %109 = tpu.memref_squeeze %108 : memref<1x1x128xf32, #tpu.memory_space<vmem>> -> memref<1x128xf32, #tpu.memory_space<vmem>>
      %110 = tpu.memref_slice %arg9[%c0_i32_62] : memref<2x!tpu.dma_semaphore, #tpu.memory_space<semaphore_mem>> -> memref<1x!tpu.dma_semaphore, #tpu.memory_space<semaphore_mem>>
      %111 = tpu.memref_squeeze %110 : memref<1x!tpu.dma_semaphore, #tpu.memory_space<semaphore_mem>> -> memref<!tpu.dma_semaphore, #tpu.memory_space<semaphore_mem>>
      tpu.enqueue_dma source(%107 : memref<1x128xf32, #tpu.memory_space<any>>) target(%109 : memref<1x128xf32, #tpu.memory_space<vmem>>) target_semaphore(%111 : memref<!tpu.dma_semaphore, #tpu.memory_space<semaphore_mem>>)
      %c7_i32 = arith.constant 7 : i32
      %112 = arith.addi %55, %c7_i32 : i32
      %113 = arith.index_cast %112 : i32 to index
      %114 = memref.load %arg2[%113] : memref<16xi32, #tpu.memory_space<smem>>
      %c0_i32_66 = arith.constant 0 : i32
      %c0_i32_67 = arith.constant 0 : i32
      %c0_i32_68 = arith.constant 0 : i32
      %115 = tpu.memref_slice %arg3[%114, %c0_i32_68] : memref<64x128xf32, #tpu.memory_space<any>> -> memref<1x128xf32, #tpu.memory_space<any>>
      %c7_i32_69 = arith.constant 7 : i32
      %c0_i32_70 = arith.constant 0 : i32
      %116 = tpu.memref_slice %arg8[%c0_i32_66, %c7_i32_69, %c0_i32_70] : memref<2x8x128xf32, #tpu.memory_space<vmem>> -> memref<1x1x128xf32, #tpu.memory_space<vmem>>
      %117 = tpu.memref_squeeze %116 : memref<1x1x128xf32, #tpu.memory_space<vmem>> -> memref<1x128xf32, #tpu.memory_space<vmem>>
      %118 = tpu.memref_slice %arg9[%c0_i32_67] : memref<2x!tpu.dma_semaphore, #tpu.memory_space<semaphore_mem>> -> memref<1x!tpu.dma_semaphore, #tpu.memory_space<semaphore_mem>>
      %119 = tpu.memref_squeeze %118 : memref<1x!tpu.dma_semaphore, #tpu.memory_space<semaphore_mem>> -> memref<!tpu.dma_semaphore, #tpu.memory_space<semaphore_mem>>
      tpu.enqueue_dma source(%115 : memref<1x128xf32, #tpu.memory_space<any>>) target(%117 : memref<1x128xf32, #tpu.memory_space<vmem>>) target_semaphore(%119 : memref<!tpu.dma_semaphore, #tpu.memory_space<semaphore_mem>>)
    } else {
    }
    %c1_i32_6 = arith.constant 1 : i32
    %14 = arith.addi %arg1, %c1_i32_6 : i32
    %c2_i32_7 = arith.constant 2 : i32
    %15 = arith.cmpi slt, %14, %c2_i32_7 : i32
    %16 = arith.extui %15 : i1 to i32
    %c0_i32_8 = arith.constant 0 : i32
    %17 = arith.cmpi ne, %16, %c0_i32_8 : i32
    scf.if %17 {
      %c1_i32_27 = arith.constant 1 : i32
      %54 = arith.addi %arg1, %c1_i32_27 : i32
      %c8_i32 = arith.constant 8 : i32
      %55 = arith.muli %54, %c8_i32 : i32
      %c8_i32_28 = arith.constant 8 : i32
      %56 = arith.muli %arg0, %c8_i32_28 : i32
      %57 = arith.addi %55, %56 : i32
      %c0_i32_29 = arith.constant 0 : i32
      %58 = arith.addi %57, %c0_i32_29 : i32
      %59 = arith.index_cast %58 : i32 to index
      %60 = memref.load %arg2[%59] : memref<16xi32, #tpu.memory_space<smem>>
      %c0_i32_30 = arith.constant 0 : i32
      %61 = tpu.memref_slice %arg3[%60, %c0_i32_30] : memref<64x128xf32, #tpu.memory_space<any>> -> memref<1x128xf32, #tpu.memory_space<any>>
      %c0_i32_31 = arith.constant 0 : i32
      %c0_i32_32 = arith.constant 0 : i32
      %62 = tpu.memref_slice %arg8[%10, %c0_i32_31, %c0_i32_32] : memref<2x8x128xf32, #tpu.memory_space<vmem>> -> memref<1x1x128xf32, #tpu.memory_space<vmem>>
      %63 = tpu.memref_squeeze %62 : memref<1x1x128xf32, #tpu.memory_space<vmem>> -> memref<1x128xf32, #tpu.memory_space<vmem>>
      %64 = tpu.memref_slice %arg9[%10] : memref<2x!tpu.dma_semaphore, #tpu.memory_space<semaphore_mem>> -> memref<1x!tpu.dma_semaphore, #tpu.memory_space<semaphore_mem>>
      %65 = tpu.memref_squeeze %64 : memref<1x!tpu.dma_semaphore, #tpu.memory_space<semaphore_mem>> -> memref<!tpu.dma_semaphore, #tpu.memory_space<semaphore_mem>>
      tpu.enqueue_dma source(%61 : memref<1x128xf32, #tpu.memory_space<any>>) target(%63 : memref<1x128xf32, #tpu.memory_space<vmem>>) target_semaphore(%65 : memref<!tpu.dma_semaphore, #tpu.memory_space<semaphore_mem>>)
      %c1_i32_33 = arith.constant 1 : i32
      %66 = arith.addi %57, %c1_i32_33 : i32
      %67 = arith.index_cast %66 : i32 to index
      %68 = memref.load %arg2[%67] : memref<16xi32, #tpu.memory_space<smem>>
      %c0_i32_34 = arith.constant 0 : i32
      %69 = tpu.memref_slice %arg3[%68, %c0_i32_34] : memref<64x128xf32, #tpu.memory_space<any>> -> memref<1x128xf32, #tpu.memory_space<any>>
      %c1_i32_35 = arith.constant 1 : i32
      %c0_i32_36 = arith.constant 0 : i32
      %70 = tpu.memref_slice %arg8[%10, %c1_i32_35, %c0_i32_36] : memref<2x8x128xf32, #tpu.memory_space<vmem>> -> memref<1x1x128xf32, #tpu.memory_space<vmem>>
      %71 = tpu.memref_squeeze %70 : memref<1x1x128xf32, #tpu.memory_space<vmem>> -> memref<1x128xf32, #tpu.memory_space<vmem>>
      %72 = tpu.memref_slice %arg9[%10] : memref<2x!tpu.dma_semaphore, #tpu.memory_space<semaphore_mem>> -> memref<1x!tpu.dma_semaphore, #tpu.memory_space<semaphore_mem>>
      %73 = tpu.memref_squeeze %72 : memref<1x!tpu.dma_semaphore, #tpu.memory_space<semaphore_mem>> -> memref<!tpu.dma_semaphore, #tpu.memory_space<semaphore_mem>>
      tpu.enqueue_dma source(%69 : memref<1x128xf32, #tpu.memory_space<any>>) target(%71 : memref<1x128xf32, #tpu.memory_space<vmem>>) target_semaphore(%73 : memref<!tpu.dma_semaphore, #tpu.memory_space<semaphore_mem>>)
      %c2_i32_37 = arith.constant 2 : i32
      %74 = arith.addi %57, %c2_i32_37 : i32
      %75 = arith.index_cast %74 : i32 to index
      %76 = memref.load %arg2[%75] : memref<16xi32, #tpu.memory_space<smem>>
      %c0_i32_38 = arith.constant 0 : i32
      %77 = tpu.memref_slice %arg3[%76, %c0_i32_38] : memref<64x128xf32, #tpu.memory_space<any>> -> memref<1x128xf32, #tpu.memory_space<any>>
      %c2_i32_39 = arith.constant 2 : i32
      %c0_i32_40 = arith.constant 0 : i32
      %78 = tpu.memref_slice %arg8[%10, %c2_i32_39, %c0_i32_40] : memref<2x8x128xf32, #tpu.memory_space<vmem>> -> memref<1x1x128xf32, #tpu.memory_space<vmem>>
      %79 = tpu.memref_squeeze %78 : memref<1x1x128xf32, #tpu.memory_space<vmem>> -> memref<1x128xf32, #tpu.memory_space<vmem>>
      %80 = tpu.memref_slice %arg9[%10] : memref<2x!tpu.dma_semaphore, #tpu.memory_space<semaphore_mem>> -> memref<1x!tpu.dma_semaphore, #tpu.memory_space<semaphore_mem>>
      %81 = tpu.memref_squeeze %80 : memref<1x!tpu.dma_semaphore, #tpu.memory_space<semaphore_mem>> -> memref<!tpu.dma_semaphore, #tpu.memory_space<semaphore_mem>>
      tpu.enqueue_dma source(%77 : memref<1x128xf32, #tpu.memory_space<any>>) target(%79 : memref<1x128xf32, #tpu.memory_space<vmem>>) target_semaphore(%81 : memref<!tpu.dma_semaphore, #tpu.memory_space<semaphore_mem>>)
      %c3_i32 = arith.constant 3 : i32
      %82 = arith.addi %57, %c3_i32 : i32
      %83 = arith.index_cast %82 : i32 to index
      %84 = memref.load %arg2[%83] : memref<16xi32, #tpu.memory_space<smem>>
      %c0_i32_41 = arith.constant 0 : i32
      %85 = tpu.memref_slice %arg3[%84, %c0_i32_41] : memref<64x128xf32, #tpu.memory_space<any>> -> memref<1x128xf32, #tpu.memory_space<any>>
      %c3_i32_42 = arith.constant 3 : i32
      %c0_i32_43 = arith.constant 0 : i32
      %86 = tpu.memref_slice %arg8[%10, %c3_i32_42, %c0_i32_43] : memref<2x8x128xf32, #tpu.memory_space<vmem>> -> memref<1x1x128xf32, #tpu.memory_space<vmem>>
      %87 = tpu.memref_squeeze %86 : memref<1x1x128xf32, #tpu.memory_space<vmem>> -> memref<1x128xf32, #tpu.memory_space<vmem>>
      %88 = tpu.memref_slice %arg9[%10] : memref<2x!tpu.dma_semaphore, #tpu.memory_space<semaphore_mem>> -> memref<1x!tpu.dma_semaphore, #tpu.memory_space<semaphore_mem>>
      %89 = tpu.memref_squeeze %88 : memref<1x!tpu.dma_semaphore, #tpu.memory_space<semaphore_mem>> -> memref<!tpu.dma_semaphore, #tpu.memory_space<semaphore_mem>>
      tpu.enqueue_dma source(%85 : memref<1x128xf32, #tpu.memory_space<any>>) target(%87 : memref<1x128xf32, #tpu.memory_space<vmem>>) target_semaphore(%89 : memref<!tpu.dma_semaphore, #tpu.memory_space<semaphore_mem>>)
      %c4_i32 = arith.constant 4 : i32
      %90 = arith.addi %57, %c4_i32 : i32
      %91 = arith.index_cast %90 : i32 to index
      %92 = memref.load %arg2[%91] : memref<16xi32, #tpu.memory_space<smem>>
      %c0_i32_44 = arith.constant 0 : i32
      %93 = tpu.memref_slice %arg3[%92, %c0_i32_44] : memref<64x128xf32, #tpu.memory_space<any>> -> memref<1x128xf32, #tpu.memory_space<any>>
      %c4_i32_45 = arith.constant 4 : i32
      %c0_i32_46 = arith.constant 0 : i32
      %94 = tpu.memref_slice %arg8[%10, %c4_i32_45, %c0_i32_46] : memref<2x8x128xf32, #tpu.memory_space<vmem>> -> memref<1x1x128xf32, #tpu.memory_space<vmem>>
      %95 = tpu.memref_squeeze %94 : memref<1x1x128xf32, #tpu.memory_space<vmem>> -> memref<1x128xf32, #tpu.memory_space<vmem>>
      %96 = tpu.memref_slice %arg9[%10] : memref<2x!tpu.dma_semaphore, #tpu.memory_space<semaphore_mem>> -> memref<1x!tpu.dma_semaphore, #tpu.memory_space<semaphore_mem>>
      %97 = tpu.memref_squeeze %96 : memref<1x!tpu.dma_semaphore, #tpu.memory_space<semaphore_mem>> -> memref<!tpu.dma_semaphore, #tpu.memory_space<semaphore_mem>>
      tpu.enqueue_dma source(%93 : memref<1x128xf32, #tpu.memory_space<any>>) target(%95 : memref<1x128xf32, #tpu.memory_space<vmem>>) target_semaphore(%97 : memref<!tpu.dma_semaphore, #tpu.memory_space<semaphore_mem>>)
      %c5_i32 = arith.constant 5 : i32
      %98 = arith.addi %57, %c5_i32 : i32
      %99 = arith.index_cast %98 : i32 to index
      %100 = memref.load %arg2[%99] : memref<16xi32, #tpu.memory_space<smem>>
      %c0_i32_47 = arith.constant 0 : i32
      %101 = tpu.memref_slice %arg3[%100, %c0_i32_47] : memref<64x128xf32, #tpu.memory_space<any>> -> memref<1x128xf32, #tpu.memory_space<any>>
      %c5_i32_48 = arith.constant 5 : i32
      %c0_i32_49 = arith.constant 0 : i32
      %102 = tpu.memref_slice %arg8[%10, %c5_i32_48, %c0_i32_49] : memref<2x8x128xf32, #tpu.memory_space<vmem>> -> memref<1x1x128xf32, #tpu.memory_space<vmem>>
      %103 = tpu.memref_squeeze %102 : memref<1x1x128xf32, #tpu.memory_space<vmem>> -> memref<1x128xf32, #tpu.memory_space<vmem>>
      %104 = tpu.memref_slice %arg9[%10] : memref<2x!tpu.dma_semaphore, #tpu.memory_space<semaphore_mem>> -> memref<1x!tpu.dma_semaphore, #tpu.memory_space<semaphore_mem>>
      %105 = tpu.memref_squeeze %104 : memref<1x!tpu.dma_semaphore, #tpu.memory_space<semaphore_mem>> -> memref<!tpu.dma_semaphore, #tpu.memory_space<semaphore_mem>>
      tpu.enqueue_dma source(%101 : memref<1x128xf32, #tpu.memory_space<any>>) target(%103 : memref<1x128xf32, #tpu.memory_space<vmem>>) target_semaphore(%105 : memref<!tpu.dma_semaphore, #tpu.memory_space<semaphore_mem>>)
      %c6_i32 = arith.constant 6 : i32
      %106 = arith.addi %57, %c6_i32 : i32
      %107 = arith.index_cast %106 : i32 to index
      %108 = memref.load %arg2[%107] : memref<16xi32, #tpu.memory_space<smem>>
      %c0_i32_50 = arith.constant 0 : i32
      %109 = tpu.memref_slice %arg3[%108, %c0_i32_50] : memref<64x128xf32, #tpu.memory_space<any>> -> memref<1x128xf32, #tpu.memory_space<any>>
      %c6_i32_51 = arith.constant 6 : i32
      %c0_i32_52 = arith.constant 0 : i32
      %110 = tpu.memref_slice %arg8[%10, %c6_i32_51, %c0_i32_52] : memref<2x8x128xf32, #tpu.memory_space<vmem>> -> memref<1x1x128xf32, #tpu.memory_space<vmem>>
      %111 = tpu.memref_squeeze %110 : memref<1x1x128xf32, #tpu.memory_space<vmem>> -> memref<1x128xf32, #tpu.memory_space<vmem>>
      %112 = tpu.memref_slice %arg9[%10] : memref<2x!tpu.dma_semaphore, #tpu.memory_space<semaphore_mem>> -> memref<1x!tpu.dma_semaphore, #tpu.memory_space<semaphore_mem>>
      %113 = tpu.memref_squeeze %112 : memref<1x!tpu.dma_semaphore, #tpu.memory_space<semaphore_mem>> -> memref<!tpu.dma_semaphore, #tpu.memory_space<semaphore_mem>>
      tpu.enqueue_dma source(%109 : memref<1x128xf32, #tpu.memory_space<any>>) target(%111 : memref<1x128xf32, #tpu.memory_space<vmem>>) target_semaphore(%113 : memref<!tpu.dma_semaphore, #tpu.memory_space<semaphore_mem>>)
      %c7_i32 = arith.constant 7 : i32
      %114 = arith.addi %57, %c7_i32 : i32
      %115 = arith.index_cast %114 : i32 to index
      %116 = memref.load %arg2[%115] : memref<16xi32, #tpu.memory_space<smem>>
      %c0_i32_53 = arith.constant 0 : i32
      %117 = tpu.memref_slice %arg3[%116, %c0_i32_53] : memref<64x128xf32, #tpu.memory_space<any>> -> memref<1x128xf32, #tpu.memory_space<any>>
      %c7_i32_54 = arith.constant 7 : i32
      %c0_i32_55 = arith.constant 0 : i32
      %118 = tpu.memref_slice %arg8[%10, %c7_i32_54, %c0_i32_55] : memref<2x8x128xf32, #tpu.memory_space<vmem>> -> memref<1x1x128xf32, #tpu.memory_space<vmem>>
      %119 = tpu.memref_squeeze %118 : memref<1x1x128xf32, #tpu.memory_space<vmem>> -> memref<1x128xf32, #tpu.memory_space<vmem>>
      %120 = tpu.memref_slice %arg9[%10] : memref<2x!tpu.dma_semaphore, #tpu.memory_space<semaphore_mem>> -> memref<1x!tpu.dma_semaphore, #tpu.memory_space<semaphore_mem>>
      %121 = tpu.memref_squeeze %120 : memref<1x!tpu.dma_semaphore, #tpu.memory_space<semaphore_mem>> -> memref<!tpu.dma_semaphore, #tpu.memory_space<semaphore_mem>>
      tpu.enqueue_dma source(%117 : memref<1x128xf32, #tpu.memory_space<any>>) target(%119 : memref<1x128xf32, #tpu.memory_space<vmem>>) target_semaphore(%121 : memref<!tpu.dma_semaphore, #tpu.memory_space<semaphore_mem>>)
    } else {
    }
    %c0_i32_9 = arith.constant 0 : i32
    %c0_i32_10 = arith.constant 0 : i32
    %18 = tpu.memref_slice %arg8[%10, %c0_i32_9, %c0_i32_10] : memref<2x8x128xf32, #tpu.memory_space<vmem>> -> memref<1x8x128xf32, #tpu.memory_space<vmem>>
    %19 = tpu.memref_squeeze %18 : memref<1x8x128xf32, #tpu.memory_space<vmem>> -> memref<8x128xf32, #tpu.memory_space<vmem>>
    %c0_i32_11 = arith.constant 0 : i32
    %c0_i32_12 = arith.constant 0 : i32
    %20 = tpu.memref_slice %arg8[%9, %c0_i32_11, %c0_i32_12] : memref<2x8x128xf32, #tpu.memory_space<vmem>> -> memref<1x8x128xf32, #tpu.memory_space<vmem>>
    %21 = tpu.memref_squeeze %20 : memref<1x8x128xf32, #tpu.memory_space<vmem>> -> memref<8x128xf32, #tpu.memory_space<vmem>>
    %22 = tpu.memref_slice %arg9[%9] : memref<2x!tpu.dma_semaphore, #tpu.memory_space<semaphore_mem>> -> memref<1x!tpu.dma_semaphore, #tpu.memory_space<semaphore_mem>>
    %23 = tpu.memref_squeeze %22 : memref<1x!tpu.dma_semaphore, #tpu.memory_space<semaphore_mem>> -> memref<!tpu.dma_semaphore, #tpu.memory_space<semaphore_mem>>
    tpu.wait_dma2 semaphore(%23 : memref<!tpu.dma_semaphore, #tpu.memory_space<semaphore_mem>>) src(%19 : memref<8x128xf32, #tpu.memory_space<vmem>>) dst(%21 : memref<8x128xf32, #tpu.memory_space<vmem>>)
    %24 = arith.index_cast %9 : i32 to index
    %c0 = arith.constant 0 : index
    %c0_13 = arith.constant 0 : index
    %25 = vector.load %arg8[%24, %c0, %c0_13] : memref<2x8x128xf32, #tpu.memory_space<vmem>>, vector<1x8x128xf32>
    %26 = vector.shape_cast %25 : vector<1x8x128xf32> to vector<8x128xf32>
    %c0_14 = arith.constant 0 : index
    %c0_15 = arith.constant 0 : index
    %27 = vector.load %arg4[%c0_14, %c0_15] : memref<8x128xf32, #tpu.memory_space<vmem>>, vector<8x128xf32>
    %28 = arith.addf %26, %27 : vector<8x128xf32>
    %cst = arith.constant dense<0.000000e+00> : vector<8xf32>
    %29 = vector.multi_reduction <add>, %28, %cst [1] : vector<8x128xf32> to vector<8xf32>
    %30 = vector.shape_cast %29 : vector<8xf32> to vector<8x1xf32>
    %cst_16 = arith.constant 1.280000e+02 : f32
    %31 = vector.broadcast %cst_16 : f32 to vector<8x1xf32>
    %32 = arith.divf %30, %31 : vector<8x1xf32>
    %33 = vector.broadcast %32 : vector<8x1xf32> to vector<8x128xf32>
    %34 = arith.subf %28, %33 : vector<8x128xf32>
    %35 = arith.mulf %34, %34 : vector<8x128xf32>
    %cst_17 = arith.constant dense<0.000000e+00> : vector<8xf32>
    %36 = vector.multi_reduction <add>, %35, %cst_17 [1] : vector<8x128xf32> to vector<8xf32>
    %37 = vector.shape_cast %36 : vector<8xf32> to vector<8x1xf32>
    %cst_18 = arith.constant 1.280000e+02 : f32
    %38 = vector.broadcast %cst_18 : f32 to vector<8x1xf32>
    %39 = arith.divf %37, %38 : vector<8x1xf32>
    %c0_19 = arith.constant 0 : index
    %c0_20 = arith.constant 0 : index
    %40 = vector.load %arg5[%c0_19, %c0_20] : memref<1x128xf32, #tpu.memory_space<vmem>>, vector<1x128xf32>
    %cst_21 = arith.constant 9.99999996E-13 : f32
    %41 = vector.broadcast %cst_21 : f32 to vector<8x1xf32>
    %42 = arith.addf %39, %41 : vector<8x1xf32>
    %43 = math.rsqrt %42 : vector<8x1xf32>
    %44 = vector.broadcast %40 : vector<1x128xf32> to vector<8x128xf32>
    %45 = vector.broadcast %43 : vector<8x1xf32> to vector<8x128xf32>
    %46 = arith.mulf %44, %45 : vector<8x128xf32>
    %47 = arith.mulf %34, %46 : vector<8x128xf32>
    %c0_22 = arith.constant 0 : index
    %c0_23 = arith.constant 0 : index
    %48 = vector.load %arg6[%c0_22, %c0_23] : memref<1x128xf32, #tpu.memory_space<vmem>>, vector<1x128xf32>
    %49 = vector.broadcast %48 : vector<1x128xf32> to vector<8x128xf32>
    %50 = arith.addf %47, %49 : vector<8x128xf32>
    %c0_24 = arith.constant 0 : index
    %c0_25 = arith.constant 0 : index
    %c0_26 = arith.constant 0 : index
    %51 = vector.load %arg7[%c0_24, %c0_25, %c0_26] : memref<1x8x128xf32, #tpu.memory_space<vmem>>, vector<1x8x128xf32>
    %52 = vector.shape_cast %51 : vector<1x8x128xf32> to vector<8x128xf32>
    %53 = vector.shape_cast %50 : vector<8x128xf32> to vector<1x8x128xf32>
    tpu.vector_store %arg7[%c0_24, %c0_25, %c0_26], %53 {strides = array<i32>} : memref<1x8x128xf32, #tpu.memory_space<vmem>>, vector<1x8x128xf32>,
    return
  }
  func.func @transform_1(%arg0: i32, %arg1: i32, %arg2: memref<16xi32, #tpu.memory_space<smem>>) -> (i32, i32) {
    %c0_i32 = arith.constant 0 : i32
    %c0_i32_0 = arith.constant 0 : i32
    return %arg0, %c0_i32 : i32, i32
  }
  func.func @transform_2(%arg0: i32, %arg1: i32, %arg2: memref<16xi32, #tpu.memory_space<smem>>) -> (i32, i32) {
    %c0_i32 = arith.constant 0 : i32
    %c0_i32_0 = arith.constant 0 : i32
    %c0_i32_1 = arith.constant 0 : i32
    return %c0_i32, %c0_i32_0 : i32, i32
  }
  func.func @transform_3(%arg0: i32, %arg1: i32, %arg2: memref<16xi32, #tpu.memory_space<smem>>) -> (i32, i32) {
    %c0_i32 = arith.constant 0 : i32
    %c0_i32_0 = arith.constant 0 : i32
    %c0_i32_1 = arith.constant 0 : i32
    return %c0_i32, %c0_i32_0 : i32, i32
  }
  func.func @transform_4(%arg0: i32, %arg1: i32, %arg2: memref<16xi32, #tpu.memory_space<smem>>) -> (i32, i32, i32) {
    %c0_i32 = arith.constant 0 : i32
    %c0_i32_0 = arith.constant 0 : i32
    return %arg1, %arg0, %c0_i32 : i32, i32, i32
  }
}

</mosaic_0001>

<llo_original>
// kernel: tpu_custom_call.1
$region0: #{tpu_custom_call.1}
  #allocation0 [shape = 'u32[]', space=smem, size = 0x4, offset = 0x4, fixed_abs, tag = 'smem constant byte address 0x4 - core index']
  #allocation1 [shape = 'u32[144,128]{1,0:T(1,128)}', space=vmem, size = 0x12000, scoped, tag = 'internal scratch']
  #allocation2 [shape = 'f32[2,8,128]{2,1,0:T(8,128)}', space=vmem, size = 0x2000, scoped, tag = 'scratch operand']
  #allocation3 [shape = 's32[2]{0}', space=sflag, size = 0x8, scoped, tag = 'scratch operand']
  #allocation4 [shape = 's32[1]{0}', space=sflag, size = 0x4, scoped, tag = 'scoped memory for tpu_custom_call.1']
  #allocation5 [shape = 'u8[512]{0}', space=smem, size = 0x200, scoped, tag = 'prefetched SMEM operand 0']
  #allocation10 [shape = 's32[]', space=sflag, size = 0x4, offset = 0, fixed_abs, tag = 'sflag constant byte address 0x0 - dummy sync flag']
  #allocation11 [shape = 's32[]', space=sflag, size = 0x4, offset = 0, fixed_abs, tag = 'sflag constant byte address 0x0 - dummy sync flag']
  #allocation12 [shape = 'u32[]', space=smem, size = 0x4, offset = 0x44, fixed_abs, tag = 'smem constant byte address 0x44 - assertion arg 0']
  #allocation13 [shape = 'u32[]', space=smem, size = 0x4, offset = 0x48, fixed_abs, tag = 'smem constant byte address 0x48 - assertion arg 1']
  #allocation14 [shape = 's32[]', space=sflag, size = 0x4, offset = 0, fixed_abs, tag = 'sflag constant byte address 0x0 - dummy sync flag']
  #allocation15 [shape = 's32[]', space=sflag, size = 0x4, offset = 0, fixed_abs, tag = 'sflag constant byte address 0x0 - dummy sync flag']
  #allocation16 [shape = 's32[]', space=sflag, size = 0x4, offset = 0, fixed_abs, tag = 'sflag constant byte address 0x0 - dummy sync flag']
  #allocation17 [shape = 's32[]', space=sflag, size = 0x4, offset = 0, fixed_abs, tag = 'sflag constant byte address 0x0 - dummy sync flag']
  #allocation18 [shape = 's32[]', space=sflag, size = 0x4, offset = 0, fixed_abs, tag = 'sflag constant byte address 0x0 - dummy sync flag']
  #allocation19 [shape = 's32[]', space=sflag, size = 0x4, offset = 0, fixed_abs, tag = 'sflag constant byte address 0x0 - dummy sync flag']
  #allocation20 [shape = 's32[]', space=sflag, size = 0x4, offset = 0, fixed_abs, tag = 'sflag constant byte address 0x0 - dummy sync flag']
  #allocation21 [shape = 's32[]', space=sflag, size = 0x4, offset = 0, fixed_abs, tag = 'sflag constant byte address 0x0 - dummy sync flag']
  #allocation22 [shape = 's32[]', space=sflag, size = 0x4, offset = 0, fixed_abs, tag = 'sflag constant byte address 0x0 - dummy sync flag']
  #allocation23 [shape = 's32[]', space=sflag, size = 0x4, offset = 0, fixed_abs, tag = 'sflag constant byte address 0x0 - dummy sync flag']
  #allocation24 [shape = 's32[]', space=sflag, size = 0x4, offset = 0, fixed_abs, tag = 'sflag constant byte address 0x0 - dummy sync flag']
  #allocation25 [shape = 's32[]', space=sflag, size = 0x4, offset = 0, fixed_abs, tag = 'sflag constant byte address 0x0 - dummy sync flag']
  #allocation26 [shape = 's32[]', space=sflag, size = 0x4, offset = 0, fixed_abs, tag = 'sflag constant byte address 0x0 - dummy sync flag']
  #allocation27 [shape = 's32[]', space=sflag, size = 0x4, offset = 0, fixed_abs, tag = 'sflag constant byte address 0x0 - dummy sync flag']
  #allocation28 [shape = 's32[]', space=sflag, size = 0x4, offset = 0, fixed_abs, tag = 'sflag constant byte address 0x0 - dummy sync flag']
  #allocation29 [shape = 's32[]', space=sflag, size = 0x4, offset = 0, fixed_abs, tag = 'sflag constant byte address 0x0 - dummy sync flag']
  #allocation30 [shape = 's32[]', space=sflag, size = 0x4, offset = 0, fixed_abs, tag = 'sflag constant byte address 0x0 - dummy sync flag']
  #allocation31 [shape = 's32[]', space=sflag, size = 0x4, offset = 0, fixed_abs, tag = 'sflag constant byte address 0x0 - dummy sync flag']
  #allocation32 [shape = 's32[]', space=sflag, size = 0x4, offset = 0, fixed_abs, tag = 'sflag constant byte address 0x0 - dummy sync flag']
  #allocation33 [shape = 's32[]', space=sflag, size = 0x4, offset = 0, fixed_abs, tag = 'sflag constant byte address 0x0 - dummy sync flag']
  #allocation34 [shape = 's32[]', space=sflag, size = 0x4, offset = 0, fixed_abs, tag = 'sflag constant byte address 0x0 - dummy sync flag']
  #allocation35 [shape = 's32[]', space=sflag, size = 0x4, offset = 0, fixed_abs, tag = 'sflag constant byte address 0x0 - dummy sync flag']
  #allocation36 [shape = 's32[]', space=sflag, size = 0x4, offset = 0, fixed_abs, tag = 'sflag constant byte address 0x0 - dummy sync flag']
  #allocation37 [shape = 's32[]', space=sflag, size = 0x4, offset = 0, fixed_abs, tag = 'sflag constant byte address 0x0 - dummy sync flag']
  #allocation38 [shape = 's32[]', space=sflag, size = 0x4, offset = 0, fixed_abs, tag = 'sflag constant byte address 0x0 - dummy sync flag']
  #allocation39 [shape = 's32[]', space=sflag, size = 0x4, offset = 0, fixed_abs, tag = 'sflag constant byte address 0x0 - dummy sync flag']
  #allocation40 [shape = 's32[]', space=sflag, size = 0x4, offset = 0, fixed_abs, tag = 'sflag constant byte address 0x0 - dummy sync flag']
  #allocation41 [shape = 's32[]', space=sflag, size = 0x4, offset = 0, fixed_abs, tag = 'sflag constant byte address 0x0 - dummy sync flag']
  #allocation42 [shape = 's32[]', space=sflag, size = 0x4, offset = 0, fixed_abs, tag = 'sflag constant byte address 0x0 - dummy sync flag']
  #allocation43 [shape = 's32[]', space=sflag, size = 0x4, offset = 0, fixed_abs, tag = 'sflag constant byte address 0x0 - dummy sync flag']
  %s0 = inlined_call_operand.hbm [shape: s32[16], index: 0, kind: input, shape index: {}]
  %s1 = inlined_call_operand.hbm [shape: f32[64,128], index: 1, kind: input, shape index: {}]
  %s2 = inlined_call_operand.hbm [shape: f32[8,128], index: 2, kind: input, shape index: {}]
  %s3 = inlined_call_operand.vmem [shape: f32[1,128], index: 3, kind: input, shape index: {}]
  %s4 = inlined_call_operand.vmem [shape: f32[1,128], index: 4, kind: input, shape index: {}]
  %s5 = inlined_call_operand.hbm [shape: f32[2,8,128], index: 5, kind: output, shape index: {}]
  %s6 = sld [smem:[#allocation0]]
  $region121: #{tpu_custom_call.1} parent=0
    _
  %s8 = ssub.s32 1, %s6
  %s9 = scalar_select 0, %s8, %s6
  %11 = dma.hbm_to_smem %s0, 16, [#allocation5], [#allocation4]
  %12 = dma.done [#allocation4], 16
  %13 = sfence
  $region1: #{tpu_custom_call.1} parent=0
    #allocation6 [shape = 'u8[4096]{0}', space=vmem, size = 0x1000, scoped, tag = 'input window, operand 2, single buffered']
    #allocation7 [shape = 's32[2]{0}', space=sflag, size = 0x8, scoped, tag = 'scoped memory for tpu_custom_call.1']
    #allocation8 [shape = 's32[2]{0}', space=sflag, size = 0x8, scoped, tag = 'scoped memory for tpu_custom_call.1']
    #allocation9 [shape = 'u8[8192]{0}', space=vmem, size = 0x2000, scoped, tag = 'output window, operand 0']
    %14 = vsyncpa [#allocation7], 0
    %15 = vsyncpa [#allocation8], 0
    %s16 = scalar_lea.sflag [#allocation8], 1
    %17 = vsyncpa %s16, 0
    loop: start=0, step=1, limit=4
    $region2: #{tpu_custom_call.1} parent=1 // loop_pre_header
      _
    $region3: #{tpu_custom_call.1} parent=1 // loop_header
      %s19 = sphi 0, %s23
      %p20 = scmp.ge.s32.totalorder %s19, 4
      %s26 = sphi 0, %s38
      %s27 = sphi 0, %s34
      %s28 = sphi 0, %s26
      %s29 = sphi 0, %s27
      %s30 = sphi 0, %s28
      %s31 = sphi 0, %s29
      %s41 = sphi 0, %s43
      %s44 = sphi 0, %s41
      %s45 = sphi 0, %s44
      %s61 = sphi 0, %s45
      %s65 = sphi 0, %s65
      %s67 = sphi 0, %s65
      %s68 = sphi 0, %s67
      %s82 = sphi 0, %s68
      %s86 = sphi 0, %s86
      %s88 = sphi 0, %s86
      %s89 = sphi 0, %s88
      %s103 = sphi 0, %s89
      %s111 = sphi 0, %s113
      %s114 = sphi 0, %s111
      %s115 = sphi 0, %s114
      %s131 = sphi 0, %s115
    $region4: #{tpu_custom_call.1} parent=1 // loop_header_branch
      %22 = sbr.rel (%p20) target = $region8
    $region5: #{tpu_custom_call.1} parent=1 // loop_body
      %s24 = ssub.s32 %s19, 1
      %s25 = ssub.s32 %s19, 2
      %s32 = sadd.s32 1, %s27
      %p33 = scmp.ge.s32.totalorder %s32, 2
      %s34 = scalar_select %p33, 0, %s32
      %s35 = sadd.s32 1, %s26
      %s36 = scalar_select %p33, %s35, %s26
      %p37 = scmp.ge.s32.totalorder %s36, 1
      %s38 = scalar_select %p37, 0, %s36
      %s39 = ssub.s32 %s26, %s38
      %p40 = scmp.eq.s32.totalorder %s39, 0
      %s42 = sadd.s32 %s41, 1
      %s43 = scalar_select %p40, %s41, %s42
      %p46 = pneg %p40
      %p47 = scmp.eq.s32.totalorder %s19, 1
      %p48 = por %p46, %p47
      %p49 = scmp.ne.s32.totalorder %s41, %s44
      %p50 = scmp.eq.s32.totalorder %s19, 0
      %p51 = por %p49, %p50
      %p52 = scmp.ne.s32.totalorder %s41, %s44
      %p53 = scmp.eq.s32.totalorder %s24, 1
      %p54 = por %p52, %p53
      %p55 = scmp.ne.s32.totalorder %s44, %s45
      %p56 = scmp.eq.s32.totalorder %s24, 0
      %p57 = por %p55, %p56
      %p58 = scmp.ne.s32.totalorder %s44, %s45
      %p59 = scmp.eq.s32.totalorder %s25, 1
      %p60 = por %p58, %p59
      %p62 = scmp.ne.s32.totalorder %s45, %s61
      %p63 = scmp.eq.s32.totalorder %s25, 0
      %p64 = por %p62, %p63
      %s66 = sadd.s32 %s65, 1
      %p69 = scmp.eq.s32.totalorder %s19, 1
      %p70 = scmp.ne.s32.totalorder %s65, %s67
      %p71 = scmp.eq.s32.totalorder %s19, 0
      %p72 = por %p70, %p71
      %p73 = scmp.ne.s32.totalorder %s65, %s67
      %p74 = scmp.eq.s32.totalorder %s24, 1
      %p75 = por %p73, %p74
      %p76 = scmp.ne.s32.totalorder %s67, %s68
      %p77 = scmp.eq.s32.totalorder %s24, 0
      %p78 = por %p76, %p77
      %p79 = scmp.ne.s32.totalorder %s67, %s68
      %p80 = scmp.eq.s32.totalorder %s25, 1
      %p81 = por %p79, %p80
      %p83 = scmp.ne.s32.totalorder %s68, %s82
      %p84 = scmp.eq.s32.totalorder %s25, 0
      %p85 = por %p83, %p84
      %s87 = sadd.s32 %s86, 1
      %p90 = scmp.eq.s32.totalorder %s19, 1
      %p91 = scmp.ne.s32.totalorder %s86, %s88
      %p92 = scmp.eq.s32.totalorder %s19, 0
      %p93 = por %p91, %p92
      %p94 = scmp.ne.s32.totalorder %s86, %s88
      %p95 = scmp.eq.s32.totalorder %s24, 1
      %p96 = por %p94, %p95
      %p97 = scmp.ne.s32.totalorder %s88, %s89
      %p98 = scmp.eq.s32.totalorder %s24, 0
      %p99 = por %p97, %p98
      %p100 = scmp.ne.s32.totalorder %s88, %s89
      %p101 = scmp.eq.s32.totalorder %s25, 1
      %p102 = por %p100, %p101
      %p104 = scmp.ne.s32.totalorder %s89, %s103
      %p105 = scmp.eq.s32.totalorder %s25, 0
      %p106 = por %p104, %p105
      %s107 = ssub.s32 %s27, %s34
      %s108 = ssub.s32 %s26, %s38
      %s109 = sor.u32 %s107, %s108
      %p110 = scmp.eq.s32.totalorder %s109, 0
      %s112 = sadd.s32 %s111, 1
      %s113 = scalar_select %p110, %s111, %s112
      %p116 = pneg %p110
      %p117 = scmp.eq.s32.totalorder %s19, 1
      %p118 = por %p116, %p117
      %p119 = scmp.ne.s32.totalorder %s111, %s114
      %p120 = scmp.eq.s32.totalorder %s19, 0
      %p121 = por %p119, %p120
      %p122 = scmp.ne.s32.totalorder %s111, %s114
      %p123 = scmp.eq.s32.totalorder %s24, 1
      %p124 = por %p122, %p123
      %p125 = scmp.ne.s32.totalorder %s114, %s115
      %p126 = scmp.eq.s32.totalorder %s24, 0
      %p127 = por %p125, %p126
      %p128 = scmp.ne.s32.totalorder %s114, %s115
      %p129 = scmp.eq.s32.totalorder %s25, 1
      %p130 = por %p128, %p129
      %p132 = scmp.ne.s32.totalorder %s115, %s131
      %p133 = scmp.eq.s32.totalorder %s25, 0
      %p134 = por %p132, %p133
      %p135 = scmp.le.s32.totalorder 1, %s19
      %p136 = scmp.lt.s32.totalorder %s19, 3
      %p137 = pnand %p135, %p136
      %p138 = pneg %p137
      // Predicated region
      $region9: #{tpu_custom_call.1} parent=5 // pred_check
        _
      $region10: #{tpu_custom_call.1} parent=5 // pred_check_branch
        %140 = sbr.rel (%p137) target = $region12
      $region11: #{tpu_custom_call.1} parent=5 // pred_region
        %s141 = ssub.s32 %s19, 1
        // Predicated region
        $region13: #{tpu_custom_call.1} parent=11 // pred_check
          %p142 = pneg %p57
        $region14: #{tpu_custom_call.1} parent=11 // pred_check_branch
          %144 = sbr.rel (%p142) target = $region16
        $region15: #{tpu_custom_call.1} parent=11 // pred_region
          %s146 = ssub.s32 128, 128
          %147 = vsyncadd [#allocation7], %s146
          %s148 = smul.addr %s28, 128
          %s149 = scalar_lea.hbm %s2, %s148
          %s151 = sshll.u32 [#allocation6], 4
          %s152 = int_to_ptr.vmem [resolvable:$true] %s151
          %154 = dma.hbm_to_vmem [thread:$0]  %s149, 128, %s152, [#allocation7]
        $region16: #{tpu_custom_call.1} parent=11 // pred_fallthru
          _
        // Predicated region
        $region17: #{tpu_custom_call.1} parent=11 // pred_check
          %p155 = pneg %p78
        $region18: #{tpu_custom_call.1} parent=11 // pred_check_branch
          %157 = sbr.rel (%p155) target = $region20
        $region19: #{tpu_custom_call.1} parent=11 // pred_region
          _
        $region20: #{tpu_custom_call.1} parent=11 // pred_fallthru
          _
        // Predicated region
        $region21: #{tpu_custom_call.1} parent=11 // pred_check
          %p158 = pneg %p99
        $region22: #{tpu_custom_call.1} parent=11 // pred_check_branch
          %160 = sbr.rel (%p158) target = $region24
        $region23: #{tpu_custom_call.1} parent=11 // pred_region
          _
        $region24: #{tpu_custom_call.1} parent=11 // pred_fallthru
          _
      $region12: #{tpu_custom_call.1} parent=5 // pred_fallthru
        _
      %p161 = scmp.lt.s32.totalorder %s19, 2
      // Predicated region
      $region25: #{tpu_custom_call.1} parent=5 // pred_check
        %p162 = pneg %p161
      $region26: #{tpu_custom_call.1} parent=5 // pred_check_branch
        %164 = sbr.rel (%p162) target = $region28
      $region27: #{tpu_custom_call.1} parent=5 // pred_region
        _
      $region28: #{tpu_custom_call.1} parent=5 // pred_fallthru
        _
      %p165 = scmp.le.s32.totalorder 1, %s19
      %p166 = scmp.lt.s32.totalorder %s19, 3
      %p167 = pnand %p165, %p166
      %p168 = pneg %p167
      // Predicated region
      $region29: #{tpu_custom_call.1} parent=5 // pred_check
        _
      $region30: #{tpu_custom_call.1} parent=5 // pred_check_branch
        %170 = sbr.rel (%p167) target = $region32
      $region31: #{tpu_custom_call.1} parent=5 // pred_region
        %s171 = ssub.s32 %s19, 1
        // Predicated region
        $region33: #{tpu_custom_call.1} parent=31 // pred_check
          %p172 = pneg %p57
        $region34: #{tpu_custom_call.1} parent=31 // pred_check_branch
          %174 = sbr.rel (%p172) target = $region36
        $region35: #{tpu_custom_call.1} parent=31 // pred_region
          %175 = dma.done [#allocation7], 128
        $region36: #{tpu_custom_call.1} parent=31 // pred_fallthru
          _
        %p176 = pneg %p57
        %p177 = pneg %p54
        %p178 = pneg %p78
        %p179 = pneg %p75
        %p180 = pneg %p99
        %p181 = pneg %p96
        %p182 = pneg %p127
        %p183 = pneg %p124
        %s184 = sand.u32 %s114, 1
        %s185 = scalar_lea.sflag [#allocation8], %s184
        %s186 = sand.u32 %s114, 1
        %s187 = smul.addr %s186, 8
        %s188 = scalar_lea.vmem [#allocation9], %s187
        %p189 = scmp.lt.s32.totalorder %s29, 0
        %s190 = ssub.s32 0, %s29
        %s191 = scalar_select %p189, %s190, %s29
        %s192 = sand.u32 %s191, 1
        %s193 = ssub.s32 0, %s192
        %s194 = scalar_select %p189, %s193, %s192
        %p195 = scmp.ne.s32.totalorder %s194, 0
        %p196 = scmp.lt.s32.totalorder %s194, 0
        %p197 = pnand %p196, %p195
        %p198 = pneg %p197
        %s199 = sadd.s32 %s194, 2
        %s200 = scalar_select %p198, %s199, %s194
        %s201 = ssub.s32 1, %s200
        %p202 = scmp.eq.s32.totalorder %s29, 0
        // Predicated region
        $region37: #{tpu_custom_call.1} parent=31 // pred_check
          %p203 = pneg %p202
        $region38: #{tpu_custom_call.1} parent=31 // pred_check_branch
          %205 = sbr.rel (%p203) target = $region40
        $region39: #{tpu_custom_call.1} parent=31 // pred_region
          %s206 = smul.u32 %s28, 8
          %s207 = sld [smem:[#allocation5 + %s206]]
          %s208 = smul.addr %s207, 16
          %s209 = scalar_lea.hbm %s1, %s208
          // Predicated region
          $region41: #{tpu_custom_call.1} parent=39 // pred_check
            _
          $region42: #{tpu_custom_call.1} parent=39 // pred_check_branch
            %211 = sbr.rel target = $region44
          $region43: #{tpu_custom_call.1} parent=39 // pred_region
            %212 = sst [smem:[#allocation12]] [#allocation11]
            %213 = sst [smem:[#allocation13]] [#allocation10]
          $region44: #{tpu_custom_call.1} parent=39 // pred_fallthru
            _
          %215 = shalt.err (0)
          %s217 = sshll.u32 [#allocation2], 4
          %s218 = int_to_ptr.vmem [resolvable:$true] %s217
          %220 = dma.hbm_to_vmem [thread:$0]  %s209, 16, %s218, [#allocation3]
          %s221 = sadd.s32 %s206, 1
          %s222 = sld [smem:[#allocation5 + %s221]]
          %s223 = smul.addr %s222, 16
          %s224 = scalar_lea.hbm %s1, %s223
          %s225 = scalar_lea.vmem [#allocation2], 1
          // Predicated region
          $region45: #{tpu_custom_call.1} parent=39 // pred_check
            _
          $region46: #{tpu_custom_call.1} parent=39 // pred_check_branch
            %227 = sbr.rel target = $region48
          $region47: #{tpu_custom_call.1} parent=39 // pred_region
            %228 = sst [smem:[#allocation12]] [#allocation15]
            %229 = sst [smem:[#allocation13]] [#allocation14]
          $region48: #{tpu_custom_call.1} parent=39 // pred_fallthru
            _
          %231 = shalt.err (0)
          %s233 = sshll.u32 %s225, 4
          %s234 = int_to_ptr.vmem [resolvable:$true] %s233
          %236 = dma.hbm_to_vmem [thread:$0]  %s224, 16, %s234, [#allocation3]
          %s237 = sadd.s32 %s206, 2
          %s238 = sld [smem:[#allocation5 + %s237]]
          %s239 = smul.addr %s238, 16
          %s240 = scalar_lea.hbm %s1, %s239
          %s241 = scalar_lea.vmem [#allocation2], 2
          // Predicated region
          $region49: #{tpu_custom_call.1} parent=39 // pred_check
            _
          $region50: #{tpu_custom_call.1} parent=39 // pred_check_branch
            %243 = sbr.rel target = $region52
          $region51: #{tpu_custom_call.1} parent=39 // pred_region
            %244 = sst [smem:[#allocation12]] [#allocation17]
            %245 = sst [smem:[#allocation13]] [#allocation16]
          $region52: #{tpu_custom_call.1} parent=39 // pred_fallthru
            _
          %247 = shalt.err (0)
          %s249 = sshll.u32 %s241, 4
          %s250 = int_to_ptr.vmem [resolvable:$true] %s249
          %252 = dma.hbm_to_vmem [thread:$0]  %s240, 16, %s250, [#allocation3]
          %s253 = sadd.s32 %s206, 3
          %s254 = sld [smem:[#allocation5 + %s253]]
          %s255 = smul.addr %s254, 16
          %s256 = scalar_lea.hbm %s1, %s255
          %s257 = scalar_lea.vmem [#allocation2], 3
          // Predicated region
          $region53: #{tpu_custom_call.1} parent=39 // pred_check
            _
          $region54: #{tpu_custom_call.1} parent=39 // pred_check_branch
            %259 = sbr.rel target = $region56
          $region55: #{tpu_custom_call.1} parent=39 // pred_region
            %260 = sst [smem:[#allocation12]] [#allocation19]
            %261 = sst [smem:[#allocation13]] [#allocation18]
          $region56: #{tpu_custom_call.1} parent=39 // pred_fallthru
            _
          %263 = shalt.err (0)
          %s265 = sshll.u32 %s257, 4
          %s266 = int_to_ptr.vmem [resolvable:$true] %s265
          %268 = dma.hbm_to_vmem [thread:$0]  %s256, 16, %s266, [#allocation3]
          %s269 = sadd.s32 %s206, 4
          %s270 = sld [smem:[#allocation5 + %s269]]
          %s271 = smul.addr %s270, 16
          %s272 = scalar_lea.hbm %s1, %s271
          %s273 = scalar_lea.vmem [#allocation2], 4
          // Predicated region
          $region57: #{tpu_custom_call.1} parent=39 // pred_check
            _
          $region58: #{tpu_custom_call.1} parent=39 // pred_check_branch
            %275 = sbr.rel target = $region60
          $region59: #{tpu_custom_call.1} parent=39 // pred_region
            %276 = sst [smem:[#allocation12]] [#allocation21]
            %277 = sst [smem:[#allocation13]] [#allocation20]
          $region60: #{tpu_custom_call.1} parent=39 // pred_fallthru
            _
          %279 = shalt.err (0)
          %s281 = sshll.u32 %s273, 4
          %s282 = int_to_ptr.vmem [resolvable:$true] %s281
          %284 = dma.hbm_to_vmem [thread:$0]  %s272, 16, %s282, [#allocation3]
          %s285 = sadd.s32 %s206, 5
          %s286 = sld [smem:[#allocation5 + %s285]]
          %s287 = smul.addr %s286, 16
          %s288 = scalar_lea.hbm %s1, %s287
          %s289 = scalar_lea.vmem [#allocation2], 5
          // Predicated region
          $region61: #{tpu_custom_call.1} parent=39 // pred_check
            _
          $region62: #{tpu_custom_call.1} parent=39 // pred_check_branch
            %291 = sbr.rel target = $region64
          $region63: #{tpu_custom_call.1} parent=39 // pred_region
            %292 = sst [smem:[#allocation12]] [#allocation23]
            %293 = sst [smem:[#allocation13]] [#allocation22]
          $region64: #{tpu_custom_call.1} parent=39 // pred_fallthru
            _
          %295 = shalt.err (0)
          %s297 = sshll.u32 %s289, 4
          %s298 = int_to_ptr.vmem [resolvable:$true] %s297
          %300 = dma.hbm_to_vmem [thread:$0]  %s288, 16, %s298, [#allocation3]
          %s301 = sadd.s32 %s206, 6
          %s302 = sld [smem:[#allocation5 + %s301]]
          %s303 = smul.addr %s302, 16
          %s304 = scalar_lea.hbm %s1, %s303
          %s305 = scalar_lea.vmem [#allocation2], 6
          // Predicated region
          $region65: #{tpu_custom_call.1} parent=39 // pred_check
            _
          $region66: #{tpu_custom_call.1} parent=39 // pred_check_branch
            %307 = sbr.rel target = $region68
          $region67: #{tpu_custom_call.1} parent=39 // pred_region
            %308 = sst [smem:[#allocation12]] [#allocation25]
            %309 = sst [smem:[#allocation13]] [#allocation24]
          $region68: #{tpu_custom_call.1} parent=39 // pred_fallthru
            _
          %311 = shalt.err (0)
          %s313 = sshll.u32 %s305, 4
          %s314 = int_to_ptr.vmem [resolvable:$true] %s313
          %316 = dma.hbm_to_vmem [thread:$0]  %s304, 16, %s314, [#allocation3]
          %s317 = sadd.s32 %s206, 7
          %s318 = sld [smem:[#allocation5 + %s317]]
          %s319 = smul.addr %s318, 16
          %s320 = scalar_lea.hbm %s1, %s319
          %s321 = scalar_lea.vmem [#allocation2], 7
          // Predicated region
          $region69: #{tpu_custom_call.1} parent=39 // pred_check
            _
          $region70: #{tpu_custom_call.1} parent=39 // pred_check_branch
            %323 = sbr.rel target = $region72
          $region71: #{tpu_custom_call.1} parent=39 // pred_region
            %324 = sst [smem:[#allocation12]] [#allocation27]
            %325 = sst [smem:[#allocation13]] [#allocation26]
          $region72: #{tpu_custom_call.1} parent=39 // pred_fallthru
            _
          %327 = shalt.err (0)
          %s329 = sshll.u32 %s321, 4
          %s330 = int_to_ptr.vmem [resolvable:$true] %s329
          %332 = dma.hbm_to_vmem [thread:$0]  %s320, 16, %s330, [#allocation3]
        $region40: #{tpu_custom_call.1} parent=31 // pred_fallthru
          _
        %s333 = sadd.s32 %s29, 1
        %p334 = scmp.lt.s32.totalorder %s333, 2
        // Predicated region
        $region73: #{tpu_custom_call.1} parent=31 // pred_check
          %p335 = pneg %p334
        $region74: #{tpu_custom_call.1} parent=31 // pred_check_branch
          %337 = sbr.rel (%p335) target = $region76
        $region75: #{tpu_custom_call.1} parent=31 // pred_region
          %s338 = smul.u32 %s333, 8
          %s339 = smul.u32 %s28, 8
          %s340 = sadd.s32 %s338, %s339
          %s341 = sld [smem:[#allocation5 + %s340]]
          %s342 = smul.addr %s341, 16
          %s343 = scalar_lea.hbm %s1, %s342
          %s344 = smul.u32 %s201, 8
          %s345 = scalar_lea.vmem [#allocation2], %s344
          %s346 = scalar_lea.sflag [#allocation3], %s201
          // Predicated region
          $region77: #{tpu_custom_call.1} parent=75 // pred_check
            _
          $region78: #{tpu_custom_call.1} parent=75 // pred_check_branch
            %348 = sbr.rel target = $region80
          $region79: #{tpu_custom_call.1} parent=75 // pred_region
            %349 = sst [smem:[#allocation12]] [#allocation29]
            %350 = sst [smem:[#allocation13]] [#allocation28]
          $region80: #{tpu_custom_call.1} parent=75 // pred_fallthru
            _
          %352 = shalt.err (0)
          %s354 = sshll.u32 %s345, 4
          %s355 = int_to_ptr.vmem [resolvable:$true] %s354
          %357 = dma.hbm_to_vmem [thread:$0]  %s343, 16, %s355, %s346
          %s358 = sadd.s32 %s340, 1
          %s359 = sld [smem:[#allocation5 + %s358]]
          %s360 = smul.addr %s359, 16
          %s361 = scalar_lea.hbm %s1, %s360
          %s362 = sadd.s32 1, %s344
          %s363 = scalar_lea.vmem [#allocation2], %s362
          // Predicated region
          $region81: #{tpu_custom_call.1} parent=75 // pred_check
            _
          $region82: #{tpu_custom_call.1} parent=75 // pred_check_branch
            %365 = sbr.rel target = $region84
          $region83: #{tpu_custom_call.1} parent=75 // pred_region
            %366 = sst [smem:[#allocation12]] [#allocation31]
            %367 = sst [smem:[#allocation13]] [#allocation30]
          $region84: #{tpu_custom_call.1} parent=75 // pred_fallthru
            _
          %369 = shalt.err (0)
          %s371 = sshll.u32 %s363, 4
          %s372 = int_to_ptr.vmem [resolvable:$true] %s371
          %374 = dma.hbm_to_vmem [thread:$0]  %s361, 16, %s372, %s346
          %s375 = sadd.s32 %s340, 2
          %s376 = sld [smem:[#allocation5 + %s375]]
          %s377 = smul.addr %s376, 16
          %s378 = scalar_lea.hbm %s1, %s377
          %s379 = sadd.s32 2, %s344
          %s380 = scalar_lea.vmem [#allocation2], %s379
          // Predicated region
          $region85: #{tpu_custom_call.1} parent=75 // pred_check
            _
          $region86: #{tpu_custom_call.1} parent=75 // pred_check_branch
            %382 = sbr.rel target = $region88
          $region87: #{tpu_custom_call.1} parent=75 // pred_region
            %383 = sst [smem:[#allocation12]] [#allocation33]
            %384 = sst [smem:[#allocation13]] [#allocation32]
          $region88: #{tpu_custom_call.1} parent=75 // pred_fallthru
            _
          %386 = shalt.err (0)
          %s388 = sshll.u32 %s380, 4
          %s389 = int_to_ptr.vmem [resolvable:$true] %s388
          %391 = dma.hbm_to_vmem [thread:$0]  %s378, 16, %s389, %s346
          %s392 = sadd.s32 %s340, 3
          %s393 = sld [smem:[#allocation5 + %s392]]
          %s394 = smul.addr %s393, 16
          %s395 = scalar_lea.hbm %s1, %s394
          %s396 = sadd.s32 3, %s344
          %s397 = scalar_lea.vmem [#allocation2], %s396
          // Predicated region
          $region89: #{tpu_custom_call.1} parent=75 // pred_check
            _
          $region90: #{tpu_custom_call.1} parent=75 // pred_check_branch
            %399 = sbr.rel target = $region92
          $region91: #{tpu_custom_call.1} parent=75 // pred_region
            %400 = sst [smem:[#allocation12]] [#allocation35]
            %401 = sst [smem:[#allocation13]] [#allocation34]
          $region92: #{tpu_custom_call.1} parent=75 // pred_fallthru
            _
          %403 = shalt.err (0)
          %s405 = sshll.u32 %s397, 4
          %s406 = int_to_ptr.vmem [resolvable:$true] %s405
          %408 = dma.hbm_to_vmem [thread:$0]  %s395, 16, %s406, %s346
          %s409 = sadd.s32 %s340, 4
          %s410 = sld [smem:[#allocation5 + %s409]]
          %s411 = smul.addr %s410, 16
          %s412 = scalar_lea.hbm %s1, %s411
          %s413 = sadd.s32 4, %s344
          %s414 = scalar_lea.vmem [#allocation2], %s413
          // Predicated region
          $region93: #{tpu_custom_call.1} parent=75 // pred_check
            _
          $region94: #{tpu_custom_call.1} parent=75 // pred_check_branch
            %416 = sbr.rel target = $region96
          $region95: #{tpu_custom_call.1} parent=75 // pred_region
            %417 = sst [smem:[#allocation12]] [#allocation37]
            %418 = sst [smem:[#allocation13]] [#allocation36]
          $region96: #{tpu_custom_call.1} parent=75 // pred_fallthru
            _
          %420 = shalt.err (0)
          %s422 = sshll.u32 %s414, 4
          %s423 = int_to_ptr.vmem [resolvable:$true] %s422
          %425 = dma.hbm_to_vmem [thread:$0]  %s412, 16, %s423, %s346
          %s426 = sadd.s32 %s340, 5
          %s427 = sld [smem:[#allocation5 + %s426]]
          %s428 = smul.addr %s427, 16
          %s429 = scalar_lea.hbm %s1, %s428
          %s430 = sadd.s32 5, %s344
          %s431 = scalar_lea.vmem [#allocation2], %s430
          // Predicated region
          $region97: #{tpu_custom_call.1} parent=75 // pred_check
            _
          $region98: #{tpu_custom_call.1} parent=75 // pred_check_branch
            %433 = sbr.rel target = $region100
          $region99: #{tpu_custom_call.1} parent=75 // pred_region
            %434 = sst [smem:[#allocation12]] [#allocation39]
            %435 = sst [smem:[#allocation13]] [#allocation38]
          $region100: #{tpu_custom_call.1} parent=75 // pred_fallthru
            _
          %437 = shalt.err (0)
          %s439 = sshll.u32 %s431, 4
          %s440 = int_to_ptr.vmem [resolvable:$true] %s439
          %442 = dma.hbm_to_vmem [thread:$0]  %s429, 16, %s440, %s346
          %s443 = sadd.s32 %s340, 6
          %s444 = sld [smem:[#allocation5 + %s443]]
          %s445 = smul.addr %s444, 16
          %s446 = scalar_lea.hbm %s1, %s445
          %s447 = sadd.s32 6, %s344
          %s448 = scalar_lea.vmem [#allocation2], %s447
          // Predicated region
          $region101: #{tpu_custom_call.1} parent=75 // pred_check
            _
          $region102: #{tpu_custom_call.1} parent=75 // pred_check_branch
            %450 = sbr.rel target = $region104
          $region103: #{tpu_custom_call.1} parent=75 // pred_region
            %451 = sst [smem:[#allocation12]] [#allocation41]
            %452 = sst [smem:[#allocation13]] [#allocation40]
          $region104: #{tpu_custom_call.1} parent=75 // pred_fallthru
            _
          %454 = shalt.err (0)
          %s456 = sshll.u32 %s448, 4
          %s457 = int_to_ptr.vmem [resolvable:$true] %s456
          %459 = dma.hbm_to_vmem [thread:$0]  %s446, 16, %s457, %s346
          %s460 = sadd.s32 %s340, 7
          %s461 = sld [smem:[#allocation5 + %s460]]
          %s462 = smul.addr %s461, 16
          %s463 = scalar_lea.hbm %s1, %s462
          %s464 = sadd.s32 7, %s344
          %s465 = scalar_lea.vmem [#allocation2], %s464
          // Predicated region
          $region105: #{tpu_custom_call.1} parent=75 // pred_check
            _
          $region106: #{tpu_custom_call.1} parent=75 // pred_check_branch
            %467 = sbr.rel target = $region108
          $region107: #{tpu_custom_call.1} parent=75 // pred_region
            %468 = sst [smem:[#allocation12]] [#allocation43]
            %469 = sst [smem:[#allocation13]] [#allocation42]
          $region108: #{tpu_custom_call.1} parent=75 // pred_fallthru
            _
          %471 = shalt.err (0)
          %s473 = sshll.u32 %s465, 4
          %s474 = int_to_ptr.vmem [resolvable:$true] %s473
          %476 = dma.hbm_to_vmem [thread:$0]  %s463, 16, %s474, %s346
        $region76: #{tpu_custom_call.1} parent=31 // pred_fallthru
          _
        %s477 = smul.u32 %s200, 8
        %s478 = scalar_lea.vmem [#allocation2], %s477
        %s479 = scalar_lea.sflag [#allocation3], %s200
        %s480 = smul.u32 8, 1
        %s481 = sshll.u32 %s480, 4
        %482 = dma.done %s479, %s481
        %v483 = vld [vmem:[%s478] sm:$0xff]
        %v484 = vld [vmem:[#allocation6] sm:$0xff]
        %v485 = vadd.f32 %v483, %v484
        %486 = vadd.xlane.f32.xlu0 %v485
        %v487 = vpop.xlane.xlu0 %486
        %v488 = vrcp.pop 128.0
        %v489 = vmul.f32 %v487, %v488
        %v490 = vsub.f32 %v485, %v489
        %v491 = vmul.f32 %v490, %v490
        %492 = vadd.xlane.f32.xlu0 %v491
        %v493 = vpop.xlane.xlu0 %492
        %v494 = vmul.f32 %v493, %v488
        %v495 = vld [vmem:[%s3] sm:$0x1]
        %v496 = vadd.f32 %v494, 1e-12
        %v497 = vrsqrt.pop %v496
        %v499 = vlaneseq
        %v500 = vshrl.u32 %v499, 7
        %v501 = vsub.s32 0, %v500
        %v502 = vrot.slane %v495, %v501
        %v504 = vmul.f32 %v502, %v497
        %v505 = vmul.f32 %v490, %v504
        %v506 = vld [vmem:[%s4] sm:$0x1]
        %v508 = vlaneseq
        %v509 = vshrl.u32 %v508, 7
        %v510 = vsub.s32 0, %v509
        %v511 = vrot.slane %v506, %v510
        %v513 = vadd.f32 %v505, %v511
        %514 = vst [vmem:[%s188] sm:$0xff] %v513
        %s515 = sand.u32 %s114, 1
        %s516 = scalar_lea.sflag [#allocation8], %s515
        %s517 = sand.u32 %s114, 1
        %s518 = smul.addr %s517, 8
        %s519 = scalar_lea.vmem [#allocation9], %s518
        // Predicated region
        $region109: #{tpu_custom_call.1} parent=31 // pred_check
          %p520 = pneg %p124
        $region110: #{tpu_custom_call.1} parent=31 // pred_check_branch
          %522 = sbr.rel (%p520) target = $region112
        $region111: #{tpu_custom_call.1} parent=31 // pred_region
          %s524 = ssub.s32 128, 128
          %525 = vsyncadd %s516, %s524
          %s526 = sadd.s32 %s28, %s29
          %s527 = smul.addr %s526, 128
          %s528 = scalar_lea.hbm %s5, %s527
          %s530 = sshll.u32 %s519, 4
          %s531 = int_to_ptr.vmem [resolvable:$true] %s530
          %533 = dma.vmem_to_hbm [thread:$0]  %s531, 128, %s528, %s516
        $region112: #{tpu_custom_call.1} parent=31 // pred_fallthru
          _
      $region32: #{tpu_custom_call.1} parent=5 // pred_fallthru
        _
      %p534 = scmp.le.s32.totalorder 2, %s19
      // Predicated region
      $region113: #{tpu_custom_call.1} parent=5 // pred_check
        %p535 = pneg %p534
      $region114: #{tpu_custom_call.1} parent=5 // pred_check_branch
        %537 = sbr.rel (%p535) target = $region116
      $region115: #{tpu_custom_call.1} parent=5 // pred_region
        %s538 = ssub.s32 %s19, 2
        // Predicated region
        $region117: #{tpu_custom_call.1} parent=115 // pred_check
          %p539 = pneg %p130
        $region118: #{tpu_custom_call.1} parent=115 // pred_check_branch
          %541 = sbr.rel (%p539) target = $region120
        $region119: #{tpu_custom_call.1} parent=115 // pred_region
          %s542 = sand.u32 %s115, 1
          %s543 = scalar_lea.sflag [#allocation8], %s542
          %s544 = sand.u32 %s115, 1
          %s545 = smul.addr %s544, 8
          %s546 = scalar_lea.vmem [#allocation9], %s545
          %547 = dma.done %s543, 128
        $region120: #{tpu_custom_call.1} parent=115 // pred_fallthru
          _
      $region116: #{tpu_custom_call.1} parent=5 // pred_fallthru
        _
    $region6: #{tpu_custom_call.1} parent=1 // loop_footer
      %s23 = sadd.s32 1, %s19
    $region7: #{tpu_custom_call.1} parent=1 // loop_footer_branch
      %18 = sbr.rel target = $region3
    $region8: #{tpu_custom_call.1} parent=1 // loop_exit
      _
    %548 = vsyncpa [#allocation7], 1
    %s549 = scalar_lea.sflag [#allocation7], 1
    %550 = vsyncpa %s549, 1
    %551 = vsyncpa [#allocation8], 1
    %s552 = scalar_lea.sflag [#allocation8], 1
    %553 = vsyncpa %s552, 1
  %554 = vsyncmov [#allocation3]
  %s555 = vpop.sfrf %554
  %p556 = scmp.eq.s32.totalorder %s555, 0
  %p557 = pneg %p556
  %559 = shalt.err (%p557)
  %s560 = scalar_lea.sflag [#allocation3], 1
  %561 = vsyncmov %s560
  %s562 = vpop.sfrf %561
  %p563 = scmp.eq.s32.totalorder %s562, 0
  %p564 = pneg %p563
  %566 = shalt.err (%p564)

</llo_original>
